<compile_context>
chip_gen: v5e
topology: v5e:2x2
jax: 0.10.0
libtpu: 0.0.40
codegen_flags: <defaults>
</compile_context>

<pallas_src>
import functools
import math

import jax
import jax.numpy as jnp
from jax import lax
from jax.experimental import pallas as pl
from jax.experimental.pallas import tpu as pltpu


def _round_up(x, m):
    return ((x + m - 1) // m) * m


def _fcu_up_kernel(x_ref, w_ref, scale_ref, shift_ref, o_ref):
    """One (batch, token-tile) step: 1x1 conv as channel-major matmul + BN + ReLU.

    x_ref:     (1, tn, C1)  input tokens (input dtype; cast to bf16 on the VPU)
    w_ref:     (C2, C1)     bf16 conv weight (resident, constant index_map)
    scale_ref: (C2, 1)      f32 BN scale  gamma / sqrt(var + eps)
    shift_ref: (C2, 1)      f32 BN shift  beta + scale * (bias - mean)
    o_ref:     (1, C2, tn)  bf16 channel-major output tile (spatial on lanes)
    """
    x = x_ref[0].astype(jnp.bfloat16)                     # (tn, C1)
    # (C2, C1) @ (tn, C1)^T -> (C2, tn), f32 accumulation on the MXU.
    y = lax.dot_general(
        w_ref[...], x,
        dimension_numbers=(((1,), (1,)), ((), ())),
        preferred_element_type=jnp.float32)
    y = y * scale_ref[...] + shift_ref[...]               # f32 BN epilogue
    o_ref[0] = jnp.maximum(y, 0.0).astype(o_ref.dtype)    # ReLU + bf16 store


def fcu_up(x, conv_w, conv_b, bn_gamma, bn_beta, bn_mean, bn_var,
           H, W, up_stride, *, eps=1e-5):
    """Pallas implementation of FCUUp.forward(x, H, W).

    x:       (B, 1 + H*W, C1)
    conv_w:  (C2, C1, 1, 1)   (PyTorch Conv2d weight layout)
    conv_b:  (C2,)
    bn_*:    (C2,)            inference-mode BatchNorm statistics / affine
    returns: (B, C2, H*up_stride, W*up_stride)  NCHW, matching PyTorch
    """
    B, N, C1 = x.shape
    assert N == H * W + 1, "expected 1 cls token + H*W patch tokens"
    C2 = conv_w.shape[0]
    out_dtype = x.dtype

    # ---- fold conv bias + BatchNorm (eval) into f32 per-channel scale/shift ----
    scale_v = bn_gamma / jnp.sqrt(bn_var + eps)
    shift_v = bn_beta + scale_v * (conv_b - bn_mean)
    scale = scale_v.astype(jnp.float32).reshape(C2, 1)
    shift = shift_v.astype(jnp.float32).reshape(C2, 1)
    w = conv_w.reshape(C2, C1).astype(jnp.bfloat16)        # raw weight, bf16 MXU

    # ---- token tile: whole image per step when it fits the VMEM budget ----
    in_bytes = jnp.dtype(x.dtype).itemsize
    per_row = 2 * (C1 * in_bytes) + 2 * (C2 * 2)           # double-buffered in+out
    budget = 12 * 1024 * 1024
    tn = max(128, (budget // per_row) // 128 * 128)
    tn = min(_round_up(N, 128), tn)                        # lane-dense multiple of 128
    num_tiles = pl.cdiv(N, tn)
    n_pad = num_tiles * tn                                 # output stays unmasked

    flops = 2 * B * num_tiles * tn * C1 * C2
    bytes_accessed = (B * N * C1 * in_bytes                # x read (no pre-pass)
                      + B * n_pad * C2 * 2                 # bf16 channel-major write
                      + C2 * C1 * 2 + 2 * C2 * 4)          # resident weight/scale/shift

    out = pl.pallas_call(
        _fcu_up_kernel,
        out_shape=jax.ShapeDtypeStruct((B, C2, n_pad), jnp.bfloat16),
        grid=(B, num_tiles),
        in_specs=[
            pl.BlockSpec((1, tn, C1), lambda b, j: (b, j, 0)),   # streamed tokens
            pl.BlockSpec((C2, C1), lambda b, j: (0, 0)),         # resident weight
            pl.BlockSpec((C2, 1), lambda b, j: (0, 0)),          # resident BN scale
            pl.BlockSpec((C2, 1), lambda b, j: (0, 0)),          # resident BN shift
        ],
        out_specs=pl.BlockSpec((1, C2, tn), lambda b, j: (b, 0, j)),
        compiler_params=pltpu.CompilerParams(
            dimension_semantics=("parallel", "parallel"),
            vmem_limit_bytes=32 * 1024 * 1024),
        cost_estimate=pl.CostEstimate(flops=flops, transcendentals=0,
                                      bytes_accessed=bytes_accessed),
    )(x, w, scale, shift)

    # ---- output glue: drop cls column + padding, nearest-neighbour upsample ----
    # Output is already channel-major (NCHW-flat), so this is a single fused
    # slice -> reshape -> broadcast -> cast pass (one bf16 read + final write).
    base = out[:, :, 1:1 + H * W].reshape(B, C2, H, W)
    if up_stride == 1:
        return base.astype(out_dtype)
    # TODO(synk): fuse the up^2 replication into the kernel (replica grid axes
    # writing the cached tile to multiple output blocks) to drop this extra
    # base-resolution HBM read.
    y = jnp.broadcast_to(base[:, :, :, None, :, None],
                         (B, C2, H, up_stride, W, up_stride))
    return y.reshape(B, C2, H * up_stride, W * up_stride).astype(out_dtype)


def _reference(x, conv_w, conv_b, bn_gamma, bn_beta, bn_mean, bn_var,
               H, W, up_stride, eps=1e-5):
    """Pure-JAX f32 reference mirroring the PyTorch forward (BN in eval mode)."""
    B, N, C1 = x.shape
    C2 = conv_w.shape[0]
    t = x[:, 1:, :].transpose(0, 2, 1).reshape(B, C1, H, W)          # NCHW
    y = jnp.einsum('bchw,oc->bohw', t, conv_w.reshape(C2, C1)) \
        + conv_b[None, :, None, None]
    y = (y - bn_mean[None, :, None, None]) / jnp.sqrt(
        bn_var[None, :, None, None] + eps)
    y = y * bn_gamma[None, :, None, None] + bn_beta[None, :, None, None]
    y = jnp.maximum(y, 0.0)
    y = jnp.repeat(jnp.repeat(y, up_stride, axis=2), up_stride, axis=3)
    return y


if __name__ == "__main__":
    # Small, module-consistent shapes.
    B, H, W = 2, 8, 8
    C1, C2 = 32, 16
    up_stride = 2

    key = jax.random.PRNGKey(0)
    k_x, k_w, k_b, k_g, k_be, k_m, k_v = jax.random.split(key, 7)

    x = jax.random.normal(k_x, (B, 1 + H * W, C1), dtype=jnp.float32)
    conv_w = jax.random.normal(k_w, (C2, C1, 1, 1), dtype=jnp.float32) * 0.1
    conv_b = jax.random.normal(k_b, (C2,), dtype=jnp.float32) * 0.1
    bn_gamma = 1.0 + 0.1 * jax.random.normal(k_g, (C2,), dtype=jnp.float32)
    bn_beta = 0.1 * jax.random.normal(k_be, (C2,), dtype=jnp.float32)
    bn_mean = 0.1 * jax.random.normal(k_m, (C2,), dtype=jnp.float32)
    bn_var = jnp.abs(jax.random.normal(k_v, (C2,), dtype=jnp.float32)) + 0.5

    run = jax.jit(functools.partial(fcu_up, H=H, W=W, up_stride=up_stride))
    out = run(x, conv_w, conv_b, bn_gamma, bn_beta, bn_mean, bn_var)
    out = jax.block_until_ready(out)

    assert out.shape == (B, C2, H * up_stride, W * up_stride), out.shape

    ref = _reference(x, conv_w, conv_b, bn_gamma, bn_beta, bn_mean, bn_var,
                     H, W, up_stride)
    # bf16 matmul inputs / bf16 kernel store -> slightly looser tolerance.
    assert jnp.allclose(out.astype(jnp.float32), ref, atol=3e-2, rtol=3e-2), \
        float(jnp.max(jnp.abs(out.astype(jnp.float32) - ref)))

    print("KERNEL_OK")
</pallas_src>

<mosaic_0001>
module attributes {stable_mosaic.version = 11 : i64} {
  func.func @_fcu_up_kernel(%arg0: i32, %arg1: i32, %arg2: memref<1x128x32xf32, #tpu.memory_space<vmem>>, %arg3: memref<16x32xbf16, #tpu.memory_space<vmem>>, %arg4: memref<16x1xf32, #tpu.memory_space<vmem>>, %arg5: memref<16x1xf32, #tpu.memory_space<vmem>>, %arg6: memref<1x16x128xbf16, #tpu.memory_space<vmem>>) attributes {dimension_semantics = [#tpu.dimension_semantics<parallel>, #tpu.dimension_semantics<parallel>], iteration_bounds = array<i64: 2, 1>, scalar_prefetch = 0 : i64, scratch_operands = 0 : i64, tpu.core_type = #tpu.core_type<tc>, window_params = [{transform_indices = @transform_0, window_bounds = array<i64: 1, 128, 32>}, {pipeline_mode = #tpu.pipeline_mode<synchronous>, transform_indices = @transform_1, window_bounds = array<i64: 16, 32>}, {pipeline_mode = #tpu.pipeline_mode<synchronous>, transform_indices = @transform_2, window_bounds = array<i64: 16, 1>}, {pipeline_mode = #tpu.pipeline_mode<synchronous>, transform_indices = @transform_3, window_bounds = array<i64: 16, 1>}, {transform_indices = @transform_4, window_bounds = array<i64: 1, 16, 128>}]} {
    %c0 = arith.constant 0 : index
    %c0_0 = arith.constant 0 : index
    %c0_1 = arith.constant 0 : index
    %0 = vector.load %arg2[%c0, %c0_0, %c0_1] : memref<1x128x32xf32, #tpu.memory_space<vmem>>, vector<1x128x32xf32>
    %1 = vector.shape_cast %0 : vector<1x128x32xf32> to vector<128x32xf32>
    %2 = arith.truncf %1 : vector<128x32xf32> to vector<128x32xbf16>
    %c0_2 = arith.constant 0 : index
    %c0_3 = arith.constant 0 : index
    %3 = vector.load %arg3[%c0_2, %c0_3] : memref<16x32xbf16, #tpu.memory_space<vmem>>, vector<16x32xbf16>
    %cst = arith.constant dense<0.000000e+00> : vector<16x128xf32>
    %4 = tpu.matmul %3, %2, %cst {dimension_numbers = #tpu.dot_dimension_numbers<[1], [1], [0], [0], [0, 0, 1, 0], [], []>} : vector<16x32xbf16>, vector<128x32xbf16>, vector<16x128xf32> -> vector<16x128xf32>
    %c0_4 = arith.constant 0 : index
    %c0_5 = arith.constant 0 : index
    %5 = vector.load %arg4[%c0_4, %c0_5] : memref<16x1xf32, #tpu.memory_space<vmem>>, vector<16x1xf32>
    %6 = vector.broadcast %5 : vector<16x1xf32> to vector<16x128xf32>
    %7 = arith.mulf %4, %6 : vector<16x128xf32>
    %c0_6 = arith.constant 0 : index
    %c0_7 = arith.constant 0 : index
    %8 = vector.load %arg5[%c0_6, %c0_7] : memref<16x1xf32, #tpu.memory_space<vmem>>, vector<16x1xf32>
    %9 = vector.broadcast %8 : vector<16x1xf32> to vector<16x128xf32>
    %10 = arith.addf %7, %9 : vector<16x128xf32>
    %cst_8 = arith.constant 0.000000e+00 : f32
    %11 = vector.broadcast %cst_8 : f32 to vector<16x128xf32>
    %12 = arith.maximumf %10, %11 : vector<16x128xf32>
    %13 = arith.truncf %12 : vector<16x128xf32> to vector<16x128xbf16>
    %c0_9 = arith.constant 0 : index
    %c0_10 = arith.constant 0 : index
    %c0_11 = arith.constant 0 : index
    %14 = vector.load %arg6[%c0_9, %c0_10, %c0_11] : memref<1x16x128xbf16, #tpu.memory_space<vmem>>, vector<1x16x128xbf16>
    %15 = vector.shape_cast %14 : vector<1x16x128xbf16> to vector<16x128xbf16>
    %16 = vector.shape_cast %13 : vector<16x128xbf16> to vector<1x16x128xbf16>
    tpu.vector_store %arg6[%c0_9, %c0_10, %c0_11], %16 {strides = array<i32>} : memref<1x16x128xbf16, #tpu.memory_space<vmem>>, vector<1x16x128xbf16>,
    return
  }
  func.func @transform_0(%arg0: i32, %arg1: i32) -> (i32, i32, i32) {
    %c0_i32 = arith.constant 0 : i32
    %c0_i32_0 = arith.constant 0 : i32
    return %arg0, %arg1, %c0_i32 : i32, i32, i32
  }
  func.func @transform_1(%arg0: i32, %arg1: i32) -> (i32, i32) {
    %c0_i32 = arith.constant 0 : i32
    %c0_i32_0 = arith.constant 0 : i32
    %c0_i32_1 = arith.constant 0 : i32
    return %c0_i32, %c0_i32_0 : i32, i32
  }
  func.func @transform_2(%arg0: i32, %arg1: i32) -> (i32, i32) {
    %c0_i32 = arith.constant 0 : i32
    %c0_i32_0 = arith.constant 0 : i32
    %c0_i32_1 = arith.constant 0 : i32
    return %c0_i32, %c0_i32_0 : i32, i32
  }
  func.func @transform_3(%arg0: i32, %arg1: i32) -> (i32, i32) {
    %c0_i32 = arith.constant 0 : i32
    %c0_i32_0 = arith.constant 0 : i32
    %c0_i32_1 = arith.constant 0 : i32
    return %c0_i32, %c0_i32_0 : i32, i32
  }
  func.func @transform_4(%arg0: i32, %arg1: i32) -> (i32, i32, i32) {
    %c0_i32 = arith.constant 0 : i32
    %c0_i32_0 = arith.constant 0 : i32
    return %arg0, %c0_i32, %arg1 : i32, i32, i32
  }
}

</mosaic_0001>

<llo_original>
// kernel: fcu_up.1
$region0: #{fcu_up.1}
  #allocation0 [shape = 'u32[]', space=smem, size = 0x4, offset = 0x4, fixed_abs, tag = 'smem constant byte address 0x4 - core index']
  #allocation1 [shape = 'u32[72,128]{1,0:T(1,128)}', space=vmem, size = 0x9000, scoped, tag = 'internal scratch']
  %s0 = inlined_call_operand.vmem [shape: f32[2,65,32], index: 0, kind: input, shape index: {}]
  %s1 = inlined_call_operand.vmem [shape: bf16[16,32], index: 1, kind: input, shape index: {}]
  %s2 = inlined_call_operand.vmem [shape: f32[16,1], index: 2, kind: input, shape index: {}]
  %s3 = inlined_call_operand.vmem [shape: f32[16,1], index: 3, kind: input, shape index: {}]
  %s4 = inlined_call_operand.vmem [shape: bf16[2,16,128], index: 4, kind: output, shape index: {}]
  %s5 = sld [smem:[#allocation0]]
  $region49: #{fcu_up.1} parent=0
    _
  %s7 = ssub.s32 1, %s5
  %s8 = scalar_select 0, %s7, %s5
  loop: start=0, step=1, limit=4
  $region2: #{fcu_up.1} parent=0 // loop_pre_header
    _
  $region3: #{fcu_up.1} parent=0 // loop_header
    %s10 = sphi 0, %s14
    %p11 = scmp.ge.s32.totalorder %s10, 4
    %s17 = sphi 0, %s29
    %s18 = sphi 0, %s25
    %s19 = sphi 0, %s17
    %s20 = sphi 0, %s18
    %s21 = sphi 0, %s19
    %s22 = sphi 0, %s20
    %s34 = sphi 0, %s36
    %s37 = sphi 0, %s34
    %s38 = sphi 0, %s37
    %s54 = sphi 0, %s38
    %s58 = sphi 0, %s58
    %s60 = sphi 0, %s58
    %s61 = sphi 0, %s60
    %s75 = sphi 0, %s61
    %s79 = sphi 0, %s79
    %s81 = sphi 0, %s79
    %s82 = sphi 0, %s81
    %s96 = sphi 0, %s82
    %s100 = sphi 0, %s100
    %s102 = sphi 0, %s100
    %s103 = sphi 0, %s102
    %s117 = sphi 0, %s103
    %s125 = sphi 0, %s127
    %s128 = sphi 0, %s125
    %s129 = sphi 0, %s128
    %s145 = sphi 0, %s129
  $region4: #{fcu_up.1} parent=0 // loop_header_branch
    %13 = sbr.rel (%p11) target = $region8
  $region5: #{fcu_up.1} parent=0 // loop_body
    %s15 = ssub.s32 %s10, 1
    %s16 = ssub.s32 %s10, 2
    %s23 = sadd.s32 1, %s18
    %p24 = scmp.ge.s32.totalorder %s23, 1
    %s25 = scalar_select %p24, 0, %s23
    %s26 = sadd.s32 1, %s17
    %s27 = scalar_select %p24, %s26, %s17
    %p28 = scmp.ge.s32.totalorder %s27, 2
    %s29 = scalar_select %p28, 0, %s27
    %s30 = ssub.s32 %s17, %s29
    %s31 = ssub.s32 %s18, %s25
    %s32 = sor.u32 %s30, %s31
    %p33 = scmp.eq.s32.totalorder %s32, 0
    %s35 = sadd.s32 %s34, 1
    %s36 = scalar_select %p33, %s34, %s35
    %p39 = pneg %p33
    %p40 = scmp.eq.s32.totalorder %s10, 1
    %p41 = por %p39, %p40
    %p42 = scmp.ne.s32.totalorder %s34, %s37
    %p43 = scmp.eq.s32.totalorder %s10, 0
    %p44 = por %p42, %p43
    %p45 = scmp.ne.s32.totalorder %s34, %s37
    %p46 = scmp.eq.s32.totalorder %s15, 1
    %p47 = por %p45, %p46
    %p48 = scmp.ne.s32.totalorder %s37, %s38
    %p49 = scmp.eq.s32.totalorder %s15, 0
    %p50 = por %p48, %p49
    %p51 = scmp.ne.s32.totalorder %s37, %s38
    %p52 = scmp.eq.s32.totalorder %s16, 1
    %p53 = por %p51, %p52
    %p55 = scmp.ne.s32.totalorder %s38, %s54
    %p56 = scmp.eq.s32.totalorder %s16, 0
    %p57 = por %p55, %p56
    %s59 = sadd.s32 %s58, 1
    %p62 = scmp.eq.s32.totalorder %s10, 1
    %p63 = scmp.ne.s32.totalorder %s58, %s60
    %p64 = scmp.eq.s32.totalorder %s10, 0
    %p65 = por %p63, %p64
    %p66 = scmp.ne.s32.totalorder %s58, %s60
    %p67 = scmp.eq.s32.totalorder %s15, 1
    %p68 = por %p66, %p67
    %p69 = scmp.ne.s32.totalorder %s60, %s61
    %p70 = scmp.eq.s32.totalorder %s15, 0
    %p71 = por %p69, %p70
    %p72 = scmp.ne.s32.totalorder %s60, %s61
    %p73 = scmp.eq.s32.totalorder %s16, 1
    %p74 = por %p72, %p73
    %p76 = scmp.ne.s32.totalorder %s61, %s75
    %p77 = scmp.eq.s32.totalorder %s16, 0
    %p78 = por %p76, %p77
    %s80 = sadd.s32 %s79, 1
    %p83 = scmp.eq.s32.totalorder %s10, 1
    %p84 = scmp.ne.s32.totalorder %s79, %s81
    %p85 = scmp.eq.s32.totalorder %s10, 0
    %p86 = por %p84, %p85
    %p87 = scmp.ne.s32.totalorder %s79, %s81
    %p88 = scmp.eq.s32.totalorder %s15, 1
    %p89 = por %p87, %p88
    %p90 = scmp.ne.s32.totalorder %s81, %s82
    %p91 = scmp.eq.s32.totalorder %s15, 0
    %p92 = por %p90, %p91
    %p93 = scmp.ne.s32.totalorder %s81, %s82
    %p94 = scmp.eq.s32.totalorder %s16, 1
    %p95 = por %p93, %p94
    %p97 = scmp.ne.s32.totalorder %s82, %s96
    %p98 = scmp.eq.s32.totalorder %s16, 0
    %p99 = por %p97, %p98
    %s101 = sadd.s32 %s100, 1
    %p104 = scmp.eq.s32.totalorder %s10, 1
    %p105 = scmp.ne.s32.totalorder %s100, %s102
    %p106 = scmp.eq.s32.totalorder %s10, 0
    %p107 = por %p105, %p106
    %p108 = scmp.ne.s32.totalorder %s100, %s102
    %p109 = scmp.eq.s32.totalorder %s15, 1
    %p110 = por %p108, %p109
    %p111 = scmp.ne.s32.totalorder %s102, %s103
    %p112 = scmp.eq.s32.totalorder %s15, 0
    %p113 = por %p111, %p112
    %p114 = scmp.ne.s32.totalorder %s102, %s103
    %p115 = scmp.eq.s32.totalorder %s16, 1
    %p116 = por %p114, %p115
    %p118 = scmp.ne.s32.totalorder %s103, %s117
    %p119 = scmp.eq.s32.totalorder %s16, 0
    %p120 = por %p118, %p119
    %s121 = ssub.s32 %s17, %s29
    %s122 = ssub.s32 %s18, %s25
    %s123 = sor.u32 %s121, %s122
    %p124 = scmp.eq.s32.totalorder %s123, 0
    %s126 = sadd.s32 %s125, 1
    %s127 = scalar_select %p124, %s125, %s126
    %p130 = pneg %p124
    %p131 = scmp.eq.s32.totalorder %s10, 1
    %p132 = por %p130, %p131
    %p133 = scmp.ne.s32.totalorder %s125, %s128
    %p134 = scmp.eq.s32.totalorder %s10, 0
    %p135 = por %p133, %p134
    %p136 = scmp.ne.s32.totalorder %s125, %s128
    %p137 = scmp.eq.s32.totalorder %s15, 1
    %p138 = por %p136, %p137
    %p139 = scmp.ne.s32.totalorder %s128, %s129
    %p140 = scmp.eq.s32.totalorder %s15, 0
    %p141 = por %p139, %p140
    %p142 = scmp.ne.s32.totalorder %s128, %s129
    %p143 = scmp.eq.s32.totalorder %s16, 1
    %p144 = por %p142, %p143
    %p146 = scmp.ne.s32.totalorder %s129, %s145
    %p147 = scmp.eq.s32.totalorder %s16, 0
    %p148 = por %p146, %p147
    %p149 = scmp.le.s32.totalorder 1, %s10
    %p150 = scmp.lt.s32.totalorder %s10, 3
    %p151 = pnand %p149, %p150
    %p152 = pneg %p151
    // Predicated region
    $region9: #{fcu_up.1} parent=5 // pred_check
      _
    $region10: #{fcu_up.1} parent=5 // pred_check_branch
      %154 = sbr.rel (%p151) target = $region12
    $region11: #{fcu_up.1} parent=5 // pred_region
      %s155 = ssub.s32 %s10, 1
      // Predicated region
      $region13: #{fcu_up.1} parent=11 // pred_check
        %p156 = pneg %p71
      $region14: #{fcu_up.1} parent=11 // pred_check_branch
        %158 = sbr.rel (%p156) target = $region16
      $region15: #{fcu_up.1} parent=11 // pred_region
        _
      $region16: #{fcu_up.1} parent=11 // pred_fallthru
        _
      // Predicated region
      $region17: #{fcu_up.1} parent=11 // pred_check
        %p159 = pneg %p92
      $region18: #{fcu_up.1} parent=11 // pred_check_branch
        %161 = sbr.rel (%p159) target = $region20
      $region19: #{fcu_up.1} parent=11 // pred_region
        _
      $region20: #{fcu_up.1} parent=11 // pred_fallthru
        _
      // Predicated region
      $region21: #{fcu_up.1} parent=11 // pred_check
        %p162 = pneg %p113
      $region22: #{fcu_up.1} parent=11 // pred_check_branch
        %164 = sbr.rel (%p162) target = $region24
      $region23: #{fcu_up.1} parent=11 // pred_region
        _
      $region24: #{fcu_up.1} parent=11 // pred_fallthru
        _
    $region12: #{fcu_up.1} parent=5 // pred_fallthru
      _
    %p165 = scmp.lt.s32.totalorder %s10, 2
    // Predicated region
    $region25: #{fcu_up.1} parent=5 // pred_check
      %p166 = pneg %p165
    $region26: #{fcu_up.1} parent=5 // pred_check_branch
      %168 = sbr.rel (%p166) target = $region28
    $region27: #{fcu_up.1} parent=5 // pred_region
      // Predicated region
      $region29: #{fcu_up.1} parent=27 // pred_check
        %p169 = pneg %p44
      $region30: #{fcu_up.1} parent=27 // pred_check_branch
        %171 = sbr.rel (%p169) target = $region32
      $region31: #{fcu_up.1} parent=27 // pred_region
        %s172 = smul.u32 16, %s18
        %s173 = ssub.s32 9, %s172
        %s174 = smul.u32 8, %s173
        %p175 = scmp.lt.s32.totalorder %s17, 1
        %s176 = scalar_select %p175, %s17, 1
        %p177 = scmp.lt.s32.totalorder %s172, 8
        %s178 = scalar_select %p177, %s172, 8
        %s179 = smul.addr %s176, 9
        %s180 = sadd.s32 %s178, %s179
        %s181 = smul.addr %s180, 8
        %s182 = scalar_lea.vmem %s0, %s181
        %s183 = smul.u32 16, %s18
        %s184 = ssub.s32 9, %s183
        %s185 = smul.u32 8, %s184
      $region32: #{fcu_up.1} parent=27 // pred_fallthru
        _
    $region28: #{fcu_up.1} parent=5 // pred_fallthru
      _
    %p186 = scmp.le.s32.totalorder 1, %s10
    %p187 = scmp.lt.s32.totalorder %s10, 3
    %p188 = pnand %p186, %p187
    %p189 = pneg %p188
    // Predicated region
    $region33: #{fcu_up.1} parent=5 // pred_check
      _
    $region34: #{fcu_up.1} parent=5 // pred_check_branch
      %191 = sbr.rel (%p188) target = $region36
    $region35: #{fcu_up.1} parent=5 // pred_region
      %s192 = ssub.s32 %s10, 1
      %s193 = smul.u32 16, %s20
      %s194 = ssub.s32 9, %s193
      %s195 = smul.u32 8, %s194
      %p196 = scmp.lt.s32.totalorder %s19, 1
      %s197 = scalar_select %p196, %s19, 1
      %p198 = scmp.lt.s32.totalorder %s193, 8
      %s199 = scalar_select %p198, %s193, 8
      %s200 = smul.addr %s197, 9
      %s201 = sadd.s32 %s199, %s200
      %s202 = smul.addr %s201, 8
      %s203 = scalar_lea.vmem %s0, %s202
      %p204 = pneg %p50
      %p205 = pneg %p47
      %p206 = pneg %p71
      %p207 = pneg %p68
      %p208 = pneg %p92
      %p209 = pneg %p89
      %p210 = pneg %p113
      %p211 = pneg %p110
      %p212 = pneg %p141
      %p213 = pneg %p138
      %p214 = scmp.lt.s32.totalorder %s19, 1
      %s215 = scalar_select %p214, %s19, 1
      %p216 = scmp.lt.s32.totalorder %s20, 0
      %s217 = scalar_select %p216, %s20, 0
      %s218 = smul.addr %s215, 2
      %s219 = sadd.s32 %s217, %s218
      %s220 = smul.addr %s219, 4
      %s221 = scalar_lea.vmem %s4, %s220
      %s222 = smul.u32 16, %s20
      %s223 = ssub.s32 9, %s222
      %s224 = smul.u32 8, %s223
      %p225 = scmp.lt.s32.totalorder %s19, 1
      %s226 = scalar_select %p225, %s19, 1
      %p227 = scmp.lt.s32.totalorder %s222, 8
      %s228 = scalar_select %p227, %s222, 8
      %s229 = smul.addr %s226, 9
      %s230 = sadd.s32 %s228, %s229
      %s231 = smul.addr %s230, 8
      %s232 = scalar_lea.vmem %s0, %s231
      %s233 = smul.u32 16, %s20
      %s234 = ssub.s32 9, %s233
      %s235 = smul.u32 8, %s234
      %p236 = scmp.lt.s32.totalorder %s19, 1
      %s237 = scalar_select %p236, %s19, 1
      %p238 = scmp.lt.s32.totalorder %s20, 0
      %s239 = scalar_select %p238, %s20, 0
      %s240 = smul.addr %s237, 2
      %s241 = sadd.s32 %s239, %s240
      %s242 = smul.addr %s241, 4
      %s243 = scalar_lea.vmem %s4, %s242
      %v244 = vld [vmem:[%s232] sm:$0xff]
      %v245 = vld [vmem:[%s232 + $0x8] sm:$0xff]
      %v246 = vld [vmem:[%s232 + $0x10] sm:$0xff]
      %v247 = vld [vmem:[%s232 + $0x18] sm:$0xff]
      %v248 = vld [vmem:[%s232 + $0x20] sm:$0xff]
      %v249 = vld [vmem:[%s232 + $0x28] sm:$0xff]
      %v250 = vld [vmem:[%s232 + $0x30] sm:$0xff]
      %v251 = vld [vmem:[%s232 + $0x38] sm:$0xff]
      %v252 = vld [vmem:[%s232 + $0x40] sm:$0xff]
      %v253 = vld [vmem:[%s232 + $0x48] sm:$0xff]
      %v254 = vld [vmem:[%s232 + $0x50] sm:$0xff]
      %v255 = vld [vmem:[%s232 + $0x58] sm:$0xff]
      %v256 = vld [vmem:[%s232 + $0x60] sm:$0xff]
      %v257 = vld [vmem:[%s232 + $0x68] sm:$0xff]
      %v258 = vld [vmem:[%s232 + $0x70] sm:$0xff]
      %v259 = vld [vmem:[%s232 + $0x78] sm:$0xff]
      %v260 = vpack.c.bf16 %v245, %v244
      %v261 = vpack.c.bf16 %v247, %v246
      %v262 = vpack.c.bf16 %v249, %v248
      %v263 = vpack.c.bf16 %v251, %v250
      %v264 = vpack.c.bf16 %v253, %v252
      %v265 = vpack.c.bf16 %v255, %v254
      %v266 = vpack.c.bf16 %v257, %v256
      %v267 = vpack.c.bf16 %v259, %v258
      %v268 = vld [vmem:[%s1] sm:$0xf]
      %v269 = vld [vmem:[%s1 + $0x4] sm:$0xf]
      %v272 = vunpack.c.l.b16 %v268
      %v273 = vunpack.c.l.b16 %v269
      %v274 = vpack.c.b16 %v273, %v272
      %vm275 = vcmask 261120
      %v277 = vsel %vm275, %v274, 0
      %v280 = vsel %vm275, %v260, 0
      %v283 = vsel %vm275, %v261, 0
      %v286 = vsel %vm275, %v262, 0
      %v289 = vsel %vm275, %v263, 0
      %v292 = vsel %vm275, %v264, 0
      %v295 = vsel %vm275, %v265, 0
      %v298 = vsel %vm275, %v266, 0
      %v301 = vsel %vm275, %v267, 0
      %303 = vmatpush.bf16.xpose.msra.mxu0 %v301
      %304 = vmatpush.bf16.xpose.msra.mxu0 %v298
      %305 = vmatpush.bf16.xpose.msra.mxu0 %v295
      %306 = vmatpush.bf16.xpose.msra.mxu0 %v292
      %307 = vmatpush.bf16.xpose.msra.mxu0 %v289
      %308 = vmatpush.bf16.xpose.msra.mxu0 %v286
      %309 = vmatpush.bf16.xpose.msra.mxu0 %v283
      %310 = vmatpush.bf16.xpose.msra.mxu0 %v280
      %311 = vmatmul.bf16.gmra.mxu0 %v277
      %v312 = vpop.f32.mrf.mxu0
      %v313 = vadd.f32 0.0, %v312
      %v314 = vpop.f32.mrf.mxu0
      %v315 = vadd.f32 0.0, %v314
      %316 = vdwg.mxu0
      %v317 = vld [vmem:[%s2] sm:$0xff]
      %v318 = vld [vmem:[%s2 + $0x8] sm:$0xff]
      %320 = vset.pattern.permute.xlu0 0
      %321 = vperm.xlu0 %320, %v317
      %v322 = vpop.permute.xlu0 %321
      %325 = vset.pattern.permute.xlu0 0
      %326 = vperm.xlu0 %325, %v318
      %v327 = vpop.permute.xlu0 %326
      %v329 = vmul.f32 %v313, %v322
      %v330 = vmul.f32 %v315, %v327
      %v331 = vld [vmem:[%s3] sm:$0xff]
      %v332 = vld [vmem:[%s3 + $0x8] sm:$0xff]
      %334 = vset.pattern.permute.xlu0 0
      %335 = vperm.xlu0 %334, %v331
      %v336 = vpop.permute.xlu0 %335
      %339 = vset.pattern.permute.xlu0 0
      %340 = vperm.xlu0 %339, %v332
      %v341 = vpop.permute.xlu0 %340
      %v343 = vadd.f32 %v329, %v336
      %v344 = vadd.f32 %v330, %v341
      %v345 = vmax.f32 %v343, 0.0
      %v346 = vmax.f32 %v344, 0.0
      %v347 = vpack.c.bf16 %v345, %v345
      %v348 = vpack.c.bf16 %v346, %v346
      %349 = vst [vmem:[%s243] sm:$0xf] %v347
      %350 = vst [vmem:[%s243 + $0x4] sm:$0xf] %v348
      %p351 = scmp.lt.s32.totalorder %s19, 1
      %s352 = scalar_select %p351, %s19, 1
      %p353 = scmp.lt.s32.totalorder %s20, 0
      %s354 = scalar_select %p353, %s20, 0
      %s355 = smul.addr %s352, 2
      %s356 = sadd.s32 %s354, %s355
      %s357 = smul.addr %s356, 4
      %s358 = scalar_lea.vmem %s4, %s357
      // Predicated region
      $region37: #{fcu_up.1} parent=35 // pred_check
        %p359 = pneg %p138
      $region38: #{fcu_up.1} parent=35 // pred_check_branch
        %361 = sbr.rel (%p359) target = $region40
      $region39: #{fcu_up.1} parent=35 // pred_region
        _
      $region40: #{fcu_up.1} parent=35 // pred_fallthru
        _
    $region36: #{fcu_up.1} parent=5 // pred_fallthru
      _
    %p362 = scmp.le.s32.totalorder 2, %s10
    // Predicated region
    $region41: #{fcu_up.1} parent=5 // pred_check
      %p363 = pneg %p362
    $region42: #{fcu_up.1} parent=5 // pred_check_branch
      %365 = sbr.rel (%p363) target = $region44
    $region43: #{fcu_up.1} parent=5 // pred_region
      %s366 = ssub.s32 %s10, 2
      // Predicated region
      $region45: #{fcu_up.1} parent=43 // pred_check
        %p367 = pneg %p144
      $region46: #{fcu_up.1} parent=43 // pred_check_branch
        %369 = sbr.rel (%p367) target = $region48
      $region47: #{fcu_up.1} parent=43 // pred_region
        %p370 = scmp.lt.s32.totalorder %s21, 1
        %s371 = scalar_select %p370, %s21, 1
        %p372 = scmp.lt.s32.totalorder %s22, 0
        %s373 = scalar_select %p372, %s22, 0
        %s374 = smul.addr %s371, 2
        %s375 = sadd.s32 %s373, %s374
        %s376 = smul.addr %s375, 4
        %s377 = scalar_lea.vmem %s4, %s376
      $region48: #{fcu_up.1} parent=43 // pred_fallthru
        _
    $region44: #{fcu_up.1} parent=5 // pred_fallthru
      _
  $region6: #{fcu_up.1} parent=0 // loop_footer
    %s14 = sadd.s32 1, %s10
  $region7: #{fcu_up.1} parent=0 // loop_footer_branch
    %9 = sbr.rel target = $region3
  $region8: #{fcu_up.1} parent=0 // loop_exit
    _

</llo_original>
